<compile_context>
chip_gen: v7x
topology: tpu7x:2x2x1
jax: 0.10.0
libtpu: 0.0.40
codegen_flags: <defaults>
</compile_context>

<pallas_src>
import math
import numpy as np
import jax
import jax.numpy as jnp
from jax.experimental import pallas as pl
from jax.experimental.pallas import tpu as pltpu


# ----------------------------------------------------------------------------
# Diffusion schedule (host numpy; mirrors prepare_diffusion_vars exactly)
# ----------------------------------------------------------------------------
def cosine_beta_schedule(T, max_beta=0.999, s=0.008):
    def f(t, T, s):
        return np.cos((t / T + s) / (1 + s) * np.pi / 2) ** 2
    betas = []
    for t in range(T):
        alpha_bar_t = f(t + 1, T, s)
        alpha_bar_t_1 = f(t, T, s)
        betas.append(min(1 - alpha_bar_t / alpha_bar_t_1, max_beta))
    return np.array(betas, dtype=np.float64)


def prepare_diffusion_vars(num_timesteps):
    betas = cosine_beta_schedule(num_timesteps)
    alphas = 1.0 - betas
    alphas_bar = np.cumprod(alphas, axis=0)
    alphas_bar_prev = np.append(1.0, alphas_bar[:-1])
    return dict(
        betas=betas,
        alphas=alphas,
        alphas_bar=alphas_bar,
        alphas_bar_prev=alphas_bar_prev,
        sqrt_alphas_bar=np.sqrt(alphas_bar),
        sqrt_one_minus_alphas_bar=np.sqrt(1.0 - alphas_bar),
        tilde_betas_t=betas * (1 - alphas_bar_prev) / (1 - alphas_bar),
    )


def _round_up(v, m):
    return ((v + m - 1) // m) * m


MAX_TILE = 8192          # lane tile cap (VMEM-derived; ~2 MiB f32 hidden tile)


# ----------------------------------------------------------------------------
# Fused DDIM kernel.  Grid = (n_tiles,).  Per tile, all sample_steps DDIM
# steps run in an in-kernel fori_loop with x as the carry:
#   d  = W2bd^T SiLU(W1bd^T x + bias[s]) + b2      (synthetic per-pixel UNet)
#   x0 = clip(sab*x - somab*d, -1, 1)              ('V' mean mode, clip)
#   x  <- c1*x + c2*x0                             (eta=0 DDIM, algebraically
#                                                   fused update)
# coef table lives in SMEM (4 scalars/step), bias table / weights are
# resident VMEM blocks, weights + matmul activations are bf16 (f32 acc).
# ----------------------------------------------------------------------------
def ddim_fused_kernel(coef_ref, x_ref, bias_ref, w1t_ref, w2t_ref, b2_ref,
                      out_ref):
    num_steps = bias_ref.shape[0]                # static
    w1t = w1t_ref[...]                           # bf16 [HP, CP]
    w2t = w2t_ref[...]                           # bf16 [CP, HP]
    b2 = b2_ref[...]                             # f32  [CP, 1]
    x_init = x_ref[...]                          # f32  [CP, T]

    def step(s, x):
        bias = bias_ref[s]                       # f32 [HP, 1] (dynamic index)
        # per-pixel denoiser: 1x1 conv -> SiLU -> 1x1 conv (pixels on lanes)
        h = jnp.dot(w1t, x.astype(jnp.bfloat16),
                    preferred_element_type=jnp.float32)          # [HP, T]
        h = h + bias
        h = h * (0.5 * jnp.tanh(0.5 * h) + 0.5)   # SiLU via tanh (EUP slot)
        d = jnp.dot(w2t, h.astype(jnp.bfloat16),
                    preferred_element_type=jnp.float32)          # [CP, T]
        d = d + b2

        sab = coef_ref[4 * s + 0]      # sqrt(alpha_bar_t)
        somab = coef_ref[4 * s + 1]    # sqrt(1 - alpha_bar_t)
        c1 = coef_ref[4 * s + 2]       # dir_c / somab
        c2 = coef_ref[4 * s + 3]       # sqrt(ab_prev) - sab * dir_c / somab

        x0 = jnp.clip(sab * x - somab * d, -1.0, 1.0)
        return c1 * x + c2 * x0

    out_ref[...] = jax.lax.fori_loop(0, num_steps, step, x_init)


def make_fused_ddim_sampler(CP, HP, np_pack, tile, S):
    n_t = np_pack // tile
    return pl.pallas_call(
        ddim_fused_kernel,
        out_shape=jax.ShapeDtypeStruct((CP, np_pack), jnp.float32),
        grid=(n_t,),
        in_specs=[
            pl.BlockSpec(memory_space=pltpu.MemorySpace.SMEM),        # coefs
            pl.BlockSpec((CP, tile), lambda i: (0, i)),               # x
            pl.BlockSpec((S, HP, 1), lambda i: (0, 0, 0)),            # bias tbl
            pl.BlockSpec((HP, CP), lambda i: (0, 0)),                 # w1t bf16
            pl.BlockSpec((CP, HP), lambda i: (0, 0)),                 # w2t bf16
            pl.BlockSpec((CP, 1), lambda i: (0, 0)),                  # b2
        ],
        out_specs=pl.BlockSpec((CP, tile), lambda i: (0, i)),
        input_output_aliases={1: 0},       # overwrite the noise buffer in HBM
        compiler_params=pltpu.CompilerParams(
            dimension_semantics=("parallel",),
            vmem_limit_bytes=32 * 1024 * 1024),
    )


# ----------------------------------------------------------------------------
# GaussianDiffusion wrapper (schedule/coef prep = host numpy, hot path = one
# fused Pallas call, whole forward jitted).
# ----------------------------------------------------------------------------
class GaussianDiffusionPallas:
    def __init__(self, num_timesteps=1000, sample_steps=8,
                 channels=4, hidden=32, seed=0):
        self.num_timesteps = num_timesteps
        self.sample_steps = sample_steps
        self.channels = channels
        self.hidden = hidden
        self.dvars = prepare_diffusion_vars(num_timesteps)

        # deterministic synthetic denoiser params (stand-in for the UNet)
        k1, k2, k3 = jax.random.split(jax.random.PRNGKey(seed), 3)
        self.w1 = (jax.random.normal(k1, (channels, hidden), jnp.float32)
                   / math.sqrt(channels))
        self.b1 = jnp.zeros((hidden,), jnp.float32)
        self.w2 = (jax.random.normal(k2, (hidden, channels), jnp.float32)
                   / math.sqrt(hidden))
        self.b2 = jnp.zeros((channels,), jnp.float32)
        self.temb_table = 0.1 * jax.random.normal(
            k3, (num_timesteps, hidden), jnp.float32)

        # timesteps = arange(T-1, -1, -(T / sample_steps)).long()
        step = num_timesteps / sample_steps
        self.timesteps = np.arange(num_timesteps - 1, -1, -step).astype(np.int64)

        # per-step scalar coefficients (float64 -> f32), flattened for 1D SMEM
        self.coefs_np = self._make_coef_table(self.timesteps)        # [S, 4]
        self.coefs_flat = jnp.asarray(self.coefs_np.reshape(-1))     # [4*S]

        # sublane packing factor P: pack P lane-chunks so C*P fills 8 sublanes
        P = 1
        while channels * P * 2 <= 8:
            P *= 2
        self.pack = P

        # packed block-diagonal bf16 weights (pixels-on-lanes layout)
        w1t = self.w1.T                                       # [hidden, C]
        w2t = self.w2.T                                       # [C, hidden]
        eye_p = jnp.eye(P, dtype=jnp.float32)
        self.w1t_p = jnp.kron(eye_p, w1t).astype(jnp.bfloat16)   # [P*Hd, P*C]
        self.w2t_p = jnp.kron(eye_p, w2t).astype(jnp.bfloat16)   # [P*C, P*Hd]
        self.b2_p = jnp.tile(self.b2, P)[:, None]                 # [P*C, 1]

        # per-step time-embedding bias table, packed: [S, P*hidden, 1]
        t_idx = jnp.asarray(self.timesteps.astype(np.int32))
        bias = self.temb_table[t_idx] + self.b1[None, :]          # [S, hidden]
        self.bias_p = jnp.tile(bias, (1, P))[:, :, None]          # [S, P*Hd, 1]

        self._jit_forward = jax.jit(self._forward_impl)
        self._jit_forward_ref = jax.jit(self._forward_ref_impl)

    def _make_coef_table(self, timesteps, eta=0.0):
        dv = self.dvars
        S = len(timesteps)
        coefs = np.zeros((S, 4), dtype=np.float64)
        for i, t in enumerate(timesteps):
            t = int(t)
            t_prev = int(timesteps[i + 1]) if i + 1 < S else -1
            ab_prev = (dv['alphas_bar'][t_prev] if t_prev >= 0
                       else dv['alphas_bar_prev'][0])
            tilde_beta_t = dv['tilde_betas_t'][t]
            sab = dv['sqrt_alphas_bar'][t]
            somab = dv['sqrt_one_minus_alphas_bar'][t]
            sab_prev = np.sqrt(ab_prev)
            dir_c = np.sqrt(1.0 - ab_prev - tilde_beta_t * eta ** 2)
            c1 = dir_c / somab                     # multiplies x_t
            c2 = sab_prev - sab * dir_c / somab    # multiplies x_0 (clipped)
            coefs[i] = [sab, somab, c1, c2]
        return coefs.astype(np.float32)

    # ---- Pallas path ----
    def _forward_impl(self, data):
        B, C, H, W = data.shape
        assert C == self.channels
        HW = H * W
        N = B * HW
        P = self.pack
        CP = C * P
        HP = self.hidden * P
        S = self.sample_steps

        # [B,C,H,W] -> [C, B*HW]: batch folded into the lane (pixel) axis.
        xc = jnp.transpose(data.reshape(B, C, HW).astype(jnp.float32),
                           (1, 0, 2)).reshape(C, N)

        # lane tile / grid choice: lane-aligned, >=2 tiles when possible
        # (v7x's two TensorCores), capped by VMEM.
        n_pack_raw = -(-N // P)
        if n_pack_raw <= 128:
            n_t, tile = 1, 128
        else:
            n_t = max(-(-n_pack_raw // MAX_TILE), 2)
            tile = _round_up(-(-n_pack_raw // n_t), 128)
        np_pack = n_t * tile
        n_pad = P * np_pack

        xc = jnp.pad(xc, ((0, 0), (0, n_pad - N)))
        # pack P lane-chunks onto the sublane axis: [C, P, np_pack] -> [P*C, np_pack]
        xp = jnp.transpose(xc.reshape(C, P, np_pack), (1, 0, 2)).reshape(CP, np_pack)

        sampler = make_fused_ddim_sampler(CP, HP, np_pack, tile, S)
        out_p = sampler(self.coefs_flat, xp, self.bias_p,
                        self.w1t_p, self.w2t_p, self.b2_p)

        # unpack -> [B, C, H, W]
        out_c = jnp.transpose(out_p.reshape(P, C, np_pack),
                              (1, 0, 2)).reshape(C, n_pad)[:, :N]
        out = jnp.transpose(out_c.reshape(C, B, HW), (1, 0, 2))
        return out.reshape(B, C, H, W)

    def forward(self, data):
        """forward(data, return_loss=False) -> forward_test -> ddim_sample."""
        assert data.ndim == 4
        return self._jit_forward(data)

    # ---- pure-JAX reference of the same DDIM loop (validation only) ----
    def _forward_ref_impl(self, data):
        B, C, H, W = data.shape
        HW = H * W
        x3 = data.reshape(B, C, HW).astype(jnp.float32)
        dv = self.dvars
        w1b = self.w1.astype(jnp.bfloat16)
        w2b = self.w2.astype(jnp.bfloat16)
        for i, t in enumerate(self.timesteps):
            t = int(t)
            t_prev = (int(self.timesteps[i + 1])
                      if i + 1 < len(self.timesteps) else -1)
            ab_prev = (dv['alphas_bar'][t_prev] if t_prev >= 0
                       else dv['alphas_bar_prev'][0])
            tilde_beta_t = dv['tilde_betas_t'][t]
            sab = float(dv['sqrt_alphas_bar'][t])
            somab = float(dv['sqrt_one_minus_alphas_bar'][t])
            sab_prev = float(np.sqrt(ab_prev))
            dir_c = float(np.sqrt(1.0 - ab_prev - tilde_beta_t * 0.0))
            # synthetic denoiser (same bf16-input / f32-acc path as the kernel)
            h = jnp.einsum('ch,bcn->bhn', w1b, x3.astype(jnp.bfloat16),
                           preferred_element_type=jnp.float32)
            h = h + (self.temb_table[t] + self.b1)[None, :, None]
            h = h * (0.5 * jnp.tanh(0.5 * h) + 0.5)
            d = jnp.einsum('hc,bhn->bcn', w2b, h.astype(jnp.bfloat16),
                           preferred_element_type=jnp.float32)
            d = d + self.b2[None, :, None]
            # p_sample_ddim, eta=0, 'V' mean mode, clip_denoised (original form)
            x0 = jnp.clip(sab * x3 - somab * d, -1.0, 1.0)
            eps = (x3 - sab * x0) / somab
            x3 = sab_prev * x0 + dir_c * eps
        return x3.reshape(B, C, H, W)

    def forward_ref(self, data):
        return self._jit_forward_ref(data)


# TODO(synk): forward_train (timestep sampler + DDPMMSELoss), grad-guided
# sampling, langevin refinement and the ddpm_sample branch are not exercised
# by the default forward(return_loss=False) path and are not implemented.
# TODO(synk): the real UNet denoising module is external to this file; a
# deterministic per-pixel MLP (1x1 conv -> SiLU -> 1x1 conv + time embedding)
# stands in for it.

if __name__ == "__main__":
    B, C, H, W = 2, 4, 16, 16
    noise = jax.random.normal(jax.random.PRNGKey(0), (B, C, H, W), jnp.float32)

    model = GaussianDiffusionPallas(num_timesteps=1000, sample_steps=8,
                                    channels=C, hidden=32, seed=0)

    out = jax.block_until_ready(model.forward(noise))
    ref = jax.block_until_ready(model.forward_ref(noise))

    assert out.shape == (B, C, H, W)
    np.testing.assert_allclose(np.asarray(out), np.asarray(ref),
                               rtol=5e-3, atol=5e-3)
    print("KERNEL_OK")
</pallas_src>

<mosaic_0001>
module attributes {stable_mosaic.version = 11 : i64} {
  func.func @ddim_fused_kernel(%arg0: i32, %arg1: memref<32xf32, #tpu.memory_space<smem>>, %arg2: memref<8x128xf32, #tpu.memory_space<vmem>>, %arg3: memref<8x64x1xf32, #tpu.memory_space<vmem>>, %arg4: memref<64x8xbf16, #tpu.memory_space<vmem>>, %arg5: memref<8x64xbf16, #tpu.memory_space<vmem>>, %arg6: memref<8x1xf32, #tpu.memory_space<vmem>>, %arg7: memref<8x128xf32, #tpu.memory_space<vmem>>) attributes {dimension_semantics = [#tpu.dimension_semantics<parallel>], iteration_bounds = array<i64: 2>, scalar_prefetch = 0 : i64, scratch_operands = 0 : i64, tpu.core_type = #tpu.core_type<tc>, window_params = [{transform_indices = @transform_0, window_bounds = array<i64: 32>}, {transform_indices = @transform_1, window_bounds = array<i64: 8, 128>}, {pipeline_mode = #tpu.pipeline_mode<synchronous>, transform_indices = @transform_2, window_bounds = array<i64: 8, 64, 1>}, {pipeline_mode = #tpu.pipeline_mode<synchronous>, transform_indices = @transform_3, window_bounds = array<i64: 64, 8>}, {pipeline_mode = #tpu.pipeline_mode<synchronous>, transform_indices = @transform_4, window_bounds = array<i64: 8, 64>}, {pipeline_mode = #tpu.pipeline_mode<synchronous>, transform_indices = @transform_5, window_bounds = array<i64: 8, 1>}, {transform_indices = @transform_6, window_bounds = array<i64: 8, 128>}]} {
    %c0 = arith.constant 0 : index
    %c0_0 = arith.constant 0 : index
    %0 = vector.load %arg4[%c0, %c0_0] : memref<64x8xbf16, #tpu.memory_space<vmem>>, vector<64x8xbf16>
    %c0_1 = arith.constant 0 : index
    %c0_2 = arith.constant 0 : index
    %1 = vector.load %arg5[%c0_1, %c0_2] : memref<8x64xbf16, #tpu.memory_space<vmem>>, vector<8x64xbf16>
    %c0_3 = arith.constant 0 : index
    %c0_4 = arith.constant 0 : index
    %2 = vector.load %arg6[%c0_3, %c0_4] : memref<8x1xf32, #tpu.memory_space<vmem>>, vector<8x1xf32>
    %c0_5 = arith.constant 0 : index
    %c0_6 = arith.constant 0 : index
    %3 = vector.load %arg2[%c0_5, %c0_6] : memref<8x128xf32, #tpu.memory_space<vmem>>, vector<8x128xf32>
    %c0_i32 = arith.constant 0 : i32
    %c8_i32 = arith.constant 8 : i32
    %4 = arith.addi %c0_i32, %c8_i32 : i32
    %c1_i32 = arith.constant 1 : i32
    %5 = scf.for %arg8 = %c0_i32 to %4 step %c1_i32 iter_args(%arg9 = %3) -> (vector<8x128xf32>)  : i32 {
      %7 = arith.index_cast %arg8 : i32 to index
      %c0_10 = arith.constant 0 : index
      %c0_11 = arith.constant 0 : index
      %8 = vector.load %arg3[%7, %c0_10, %c0_11] : memref<8x64x1xf32, #tpu.memory_space<vmem>>, vector<1x64x1xf32>
      %9 = vector.shape_cast %8 : vector<1x64x1xf32> to vector<64x1xf32>
      %10 = arith.truncf %arg9 : vector<8x128xf32> to vector<8x128xbf16>
      %cst = arith.constant dense<0.000000e+00> : vector<64x128xf32>
      %11 = tpu.matmul %0, %10, %cst {dimension_numbers = #tpu.dot_dimension_numbers<[1], [0], [0], [1], [0, 0, 1, 1], [], []>} : vector<64x8xbf16>, vector<8x128xbf16>, vector<64x128xf32> -> vector<64x128xf32>
      %12 = vector.broadcast %9 : vector<64x1xf32> to vector<64x128xf32>
      %13 = arith.addf %11, %12 : vector<64x128xf32>
      %cst_12 = arith.constant 5.000000e-01 : f32
      %14 = vector.broadcast %cst_12 : f32 to vector<64x128xf32>
      %15 = arith.mulf %14, %13 : vector<64x128xf32>
      %16 = math.tanh %15 : vector<64x128xf32>
      %cst_13 = arith.constant 5.000000e-01 : f32
      %17 = vector.broadcast %cst_13 : f32 to vector<64x128xf32>
      %18 = arith.mulf %17, %16 : vector<64x128xf32>
      %cst_14 = arith.constant 5.000000e-01 : f32
      %19 = vector.broadcast %cst_14 : f32 to vector<64x128xf32>
      %20 = arith.addf %18, %19 : vector<64x128xf32>
      %21 = arith.mulf %13, %20 : vector<64x128xf32>
      %22 = arith.truncf %21 : vector<64x128xf32> to vector<64x128xbf16>
      %cst_15 = arith.constant dense<0.000000e+00> : vector<8x128xf32>
      %23 = tpu.matmul %1, %22, %cst_15 {dimension_numbers = #tpu.dot_dimension_numbers<[1], [0], [0], [1], [0, 0, 1, 1], [], []>} : vector<8x64xbf16>, vector<64x128xbf16>, vector<8x128xf32> -> vector<8x128xf32>
      %24 = vector.broadcast %2 : vector<8x1xf32> to vector<8x128xf32>
      %25 = arith.addf %23, %24 : vector<8x128xf32>
      %c4_i32 = arith.constant 4 : i32
      %26 = arith.muli %c4_i32, %arg8 : i32
      %c0_i32_16 = arith.constant 0 : i32
      %27 = arith.addi %26, %c0_i32_16 : i32
      %28 = arith.index_cast %27 : i32 to index
      %29 = memref.load %arg1[%28] : memref<32xf32, #tpu.memory_space<smem>>
      %c4_i32_17 = arith.constant 4 : i32
      %30 = arith.muli %c4_i32_17, %arg8 : i32
      %c1_i32_18 = arith.constant 1 : i32
      %31 = arith.addi %30, %c1_i32_18 : i32
      %32 = arith.index_cast %31 : i32 to index
      %33 = memref.load %arg1[%32] : memref<32xf32, #tpu.memory_space<smem>>
      %c4_i32_19 = arith.constant 4 : i32
      %34 = arith.muli %c4_i32_19, %arg8 : i32
      %c2_i32 = arith.constant 2 : i32
      %35 = arith.addi %34, %c2_i32 : i32
      %36 = arith.index_cast %35 : i32 to index
      %37 = memref.load %arg1[%36] : memref<32xf32, #tpu.memory_space<smem>>
      %c4_i32_20 = arith.constant 4 : i32
      %38 = arith.muli %c4_i32_20, %arg8 : i32
      %c3_i32 = arith.constant 3 : i32
      %39 = arith.addi %38, %c3_i32 : i32
      %40 = arith.index_cast %39 : i32 to index
      %41 = memref.load %arg1[%40] : memref<32xf32, #tpu.memory_space<smem>>
      %42 = vector.broadcast %29 : f32 to vector<8x128xf32>
      %43 = arith.mulf %42, %arg9 : vector<8x128xf32>
      %44 = vector.broadcast %33 : f32 to vector<8x128xf32>
      %45 = arith.mulf %44, %25 : vector<8x128xf32>
      %46 = arith.subf %43, %45 : vector<8x128xf32>
      %cst_21 = arith.constant -1.000000e+00 : f32
      %cst_22 = arith.constant 1.000000e+00 : f32
      %47 = vector.broadcast %cst_21 : f32 to vector<8x128xf32>
      %48 = arith.maximumf %47, %46 : vector<8x128xf32>
      %49 = vector.broadcast %cst_22 : f32 to vector<8x128xf32>
      %50 = arith.minimumf %49, %48 : vector<8x128xf32>
      %51 = vector.broadcast %37 : f32 to vector<8x128xf32>
      %52 = arith.mulf %51, %arg9 : vector<8x128xf32>
      %53 = vector.broadcast %41 : f32 to vector<8x128xf32>
      %54 = arith.mulf %53, %50 : vector<8x128xf32>
      %55 = arith.addf %52, %54 : vector<8x128xf32>
      scf.yield %55 : vector<8x128xf32>
    }
    %c8_i32_7 = arith.constant 8 : i32
    %c0_8 = arith.constant 0 : index
    %c0_9 = arith.constant 0 : index
    %6 = vector.load %arg7[%c0_8, %c0_9] : memref<8x128xf32, #tpu.memory_space<vmem>>, vector<8x128xf32>
    tpu.vector_store %arg7[%c0_8, %c0_9], %5 {strides = array<i32>} : memref<8x128xf32, #tpu.memory_space<vmem>>, vector<8x128xf32>,
    return
  }
  func.func @transform_0(%arg0: i32) -> i32 {
    %c0_i32 = arith.constant 0 : i32
    %c0_i32_0 = arith.constant 0 : i32
    return %c0_i32 : i32
  }
  func.func @transform_1(%arg0: i32) -> (i32, i32) {
    %c0_i32 = arith.constant 0 : i32
    %c0_i32_0 = arith.constant 0 : i32
    return %c0_i32, %arg0 : i32, i32
  }
  func.func @transform_2(%arg0: i32) -> (i32, i32, i32) {
    %c0_i32 = arith.constant 0 : i32
    %c0_i32_0 = arith.constant 0 : i32
    %c0_i32_1 = arith.constant 0 : i32
    %c0_i32_2 = arith.constant 0 : i32
    return %c0_i32, %c0_i32_0, %c0_i32_1 : i32, i32, i32
  }
  func.func @transform_3(%arg0: i32) -> (i32, i32) {
    %c0_i32 = arith.constant 0 : i32
    %c0_i32_0 = arith.constant 0 : i32
    %c0_i32_1 = arith.constant 0 : i32
    return %c0_i32, %c0_i32_0 : i32, i32
  }
  func.func @transform_4(%arg0: i32) -> (i32, i32) {
    %c0_i32 = arith.constant 0 : i32
    %c0_i32_0 = arith.constant 0 : i32
    %c0_i32_1 = arith.constant 0 : i32
    return %c0_i32, %c0_i32_0 : i32, i32
  }
  func.func @transform_5(%arg0: i32) -> (i32, i32) {
    %c0_i32 = arith.constant 0 : i32
    %c0_i32_0 = arith.constant 0 : i32
    %c0_i32_1 = arith.constant 0 : i32
    return %c0_i32, %c0_i32_0 : i32, i32
  }
  func.func @transform_6(%arg0: i32) -> (i32, i32) {
    %c0_i32 = arith.constant 0 : i32
    %c0_i32_0 = arith.constant 0 : i32
    return %c0_i32, %arg0 : i32, i32
  }
}

</mosaic_0001>

<llo_original>
// kernel: _forward_impl.1
$region0: #{_forward_impl.1}
  #allocation0 [shape = 'u32[]', space=smem, size = 0x4, offset = 0x4, fixed_abs, tag = 'smem constant byte address 0x4 - core index']
  #allocation1 [shape = 'u32[144,128]{1,0:T(1,128)}', space=vmem, size = 0x12000, scoped, tag = 'internal scratch']
  %s0 = inlined_call_operand.vmem [shape: f32[32], index: 0, kind: input, shape index: {}]
  %s1 = inlined_call_operand.vmem [shape: f32[8,256], index: 1, kind: input, shape index: {}, may-alias: {1,6}]
  %s2 = inlined_call_operand.hbm [shape: f32[8,64,1], index: 2, kind: input, shape index: {}]
  %s3 = inlined_call_operand.vmem [shape: bf16[64,8], index: 3, kind: input, shape index: {}]
  %s4 = inlined_call_operand.vmem [shape: bf16[8,64], index: 4, kind: input, shape index: {}]
  %s5 = inlined_call_operand.vmem [shape: f32[8,1], index: 5, kind: input, shape index: {}]
  %s6 = inlined_call_operand.vmem [shape: f32[8,256], index: 6, kind: output, shape index: {}, may-alias: {1,6}]
  %s7 = sld [smem:[#allocation0]]
  $region72: #{_forward_impl.1} parent=0
    _
  %s9 = ssub.s32 1, %s7
  %s10 = scalar_select 0, %s9, %s7
  $region1: #{_forward_impl.1} parent=0
    #allocation2 [shape = 'u8[512]{0}', space=smem, size = 0x200, scoped, tag = 'input window, operand 0, single buffered']
    #allocation3 [shape = 's32[2]{0}', space=sflag, size = 0x8, scoped, tag = 'scoped memory for _forward_impl.1']
    #allocation4 [shape = 's32[2]{0}', space=sflag, size = 0x8, scoped, tag = 'scoped memory for _forward_impl.1']
    #allocation5 [shape = 'u8[262144]{0}', space=vmem, size = 0x40000, scoped, tag = 'input window, operand 2, single buffered']
    %11 = vsyncpa [#allocation4], 0
    %12 = vsyncpa [#allocation3], 0
    loop: start=0, step=1, limit=4
    $region2: #{_forward_impl.1} parent=1 // loop_pre_header
      _
    $region3: #{_forward_impl.1} parent=1 // loop_header
      %s14 = sphi 0, %s18
      %p15 = scmp.ge.s32.totalorder %s14, 4
      %s22 = sphi 0, %s22
      %s24 = sphi 0, %s22
      %s25 = sphi 0, %s24
      %s39 = sphi 0, %s25
      %s45 = sphi 0, %s47
      %s48 = sphi 0, %s45
      %s49 = sphi 0, %s48
      %s65 = sphi 0, %s49
      %s69 = sphi 0, %s69
      %s71 = sphi 0, %s69
      %s72 = sphi 0, %s71
      %s86 = sphi 0, %s72
      %s90 = sphi 0, %s90
      %s92 = sphi 0, %s90
      %s93 = sphi 0, %s92
      %s107 = sphi 0, %s93
      %s111 = sphi 0, %s111
      %s113 = sphi 0, %s111
      %s114 = sphi 0, %s113
      %s128 = sphi 0, %s114
      %s132 = sphi 0, %s132
      %s134 = sphi 0, %s132
      %s135 = sphi 0, %s134
      %s149 = sphi 0, %s135
      %s155 = sphi 0, %s157
      %s158 = sphi 0, %s155
      %s159 = sphi 0, %s158
      %s175 = sphi 0, %s159
    $region4: #{_forward_impl.1} parent=1 // loop_header_branch
      %17 = sbr.rel (%p15) target = $region8
    $region5: #{_forward_impl.1} parent=1 // loop_body
      %s19 = ssub.s32 %s14, 1
      %s20 = ssub.s32 %s14, 2
      %s21 = sadd.s32 %s14, 1
      %s23 = sadd.s32 %s22, 1
      %p26 = scmp.eq.s32.totalorder %s14, 1
      %p27 = scmp.ne.s32.totalorder %s22, %s24
      %p28 = scmp.eq.s32.totalorder %s14, 0
      %p29 = por %p27, %p28
      %p30 = scmp.ne.s32.totalorder %s22, %s24
      %p31 = scmp.eq.s32.totalorder %s19, 1
      %p32 = por %p30, %p31
      %p33 = scmp.ne.s32.totalorder %s24, %s25
      %p34 = scmp.eq.s32.totalorder %s19, 0
      %p35 = por %p33, %p34
      %p36 = scmp.ne.s32.totalorder %s24, %s25
      %p37 = scmp.eq.s32.totalorder %s20, 1
      %p38 = por %p36, %p37
      %p40 = scmp.ne.s32.totalorder %s25, %s39
      %p41 = scmp.eq.s32.totalorder %s20, 0
      %p42 = por %p40, %p41
      %s43 = ssub.s32 %s14, %s21
      %p44 = scmp.eq.s32.totalorder %s43, 0
      %s46 = sadd.s32 %s45, 1
      %s47 = scalar_select %p44, %s45, %s46
      %p50 = pneg %p44
      %p51 = scmp.eq.s32.totalorder %s14, 1
      %p52 = por %p50, %p51
      %p53 = scmp.ne.s32.totalorder %s45, %s48
      %p54 = scmp.eq.s32.totalorder %s14, 0
      %p55 = por %p53, %p54
      %p56 = scmp.ne.s32.totalorder %s45, %s48
      %p57 = scmp.eq.s32.totalorder %s19, 1
      %p58 = por %p56, %p57
      %p59 = scmp.ne.s32.totalorder %s48, %s49
      %p60 = scmp.eq.s32.totalorder %s19, 0
      %p61 = por %p59, %p60
      %p62 = scmp.ne.s32.totalorder %s48, %s49
      %p63 = scmp.eq.s32.totalorder %s20, 1
      %p64 = por %p62, %p63
      %p66 = scmp.ne.s32.totalorder %s49, %s65
      %p67 = scmp.eq.s32.totalorder %s20, 0
      %p68 = por %p66, %p67
      %s70 = sadd.s32 %s69, 1
      %p73 = scmp.eq.s32.totalorder %s14, 1
      %p74 = scmp.ne.s32.totalorder %s69, %s71
      %p75 = scmp.eq.s32.totalorder %s14, 0
      %p76 = por %p74, %p75
      %p77 = scmp.ne.s32.totalorder %s69, %s71
      %p78 = scmp.eq.s32.totalorder %s19, 1
      %p79 = por %p77, %p78
      %p80 = scmp.ne.s32.totalorder %s71, %s72
      %p81 = scmp.eq.s32.totalorder %s19, 0
      %p82 = por %p80, %p81
      %p83 = scmp.ne.s32.totalorder %s71, %s72
      %p84 = scmp.eq.s32.totalorder %s20, 1
      %p85 = por %p83, %p84
      %p87 = scmp.ne.s32.totalorder %s72, %s86
      %p88 = scmp.eq.s32.totalorder %s20, 0
      %p89 = por %p87, %p88
      %s91 = sadd.s32 %s90, 1
      %p94 = scmp.eq.s32.totalorder %s14, 1
      %p95 = scmp.ne.s32.totalorder %s90, %s92
      %p96 = scmp.eq.s32.totalorder %s14, 0
      %p97 = por %p95, %p96
      %p98 = scmp.ne.s32.totalorder %s90, %s92
      %p99 = scmp.eq.s32.totalorder %s19, 1
      %p100 = por %p98, %p99
      %p101 = scmp.ne.s32.totalorder %s92, %s93
      %p102 = scmp.eq.s32.totalorder %s19, 0
      %p103 = por %p101, %p102
      %p104 = scmp.ne.s32.totalorder %s92, %s93
      %p105 = scmp.eq.s32.totalorder %s20, 1
      %p106 = por %p104, %p105
      %p108 = scmp.ne.s32.totalorder %s93, %s107
      %p109 = scmp.eq.s32.totalorder %s20, 0
      %p110 = por %p108, %p109
      %s112 = sadd.s32 %s111, 1
      %p115 = scmp.eq.s32.totalorder %s14, 1
      %p116 = scmp.ne.s32.totalorder %s111, %s113
      %p117 = scmp.eq.s32.totalorder %s14, 0
      %p118 = por %p116, %p117
      %p119 = scmp.ne.s32.totalorder %s111, %s113
      %p120 = scmp.eq.s32.totalorder %s19, 1
      %p121 = por %p119, %p120
      %p122 = scmp.ne.s32.totalorder %s113, %s114
      %p123 = scmp.eq.s32.totalorder %s19, 0
      %p124 = por %p122, %p123
      %p125 = scmp.ne.s32.totalorder %s113, %s114
      %p126 = scmp.eq.s32.totalorder %s20, 1
      %p127 = por %p125, %p126
      %p129 = scmp.ne.s32.totalorder %s114, %s128
      %p130 = scmp.eq.s32.totalorder %s20, 0
      %p131 = por %p129, %p130
      %s133 = sadd.s32 %s132, 1
      %p136 = scmp.eq.s32.totalorder %s14, 1
      %p137 = scmp.ne.s32.totalorder %s132, %s134
      %p138 = scmp.eq.s32.totalorder %s14, 0
      %p139 = por %p137, %p138
      %p140 = scmp.ne.s32.totalorder %s132, %s134
      %p141 = scmp.eq.s32.totalorder %s19, 1
      %p142 = por %p140, %p141
      %p143 = scmp.ne.s32.totalorder %s134, %s135
      %p144 = scmp.eq.s32.totalorder %s19, 0
      %p145 = por %p143, %p144
      %p146 = scmp.ne.s32.totalorder %s134, %s135
      %p147 = scmp.eq.s32.totalorder %s20, 1
      %p148 = por %p146, %p147
      %p150 = scmp.ne.s32.totalorder %s135, %s149
      %p151 = scmp.eq.s32.totalorder %s20, 0
      %p152 = por %p150, %p151
      %s153 = ssub.s32 %s14, %s21
      %p154 = scmp.eq.s32.totalorder %s153, 0
      %s156 = sadd.s32 %s155, 1
      %s157 = scalar_select %p154, %s155, %s156
      %p160 = pneg %p154
      %p161 = scmp.eq.s32.totalorder %s14, 1
      %p162 = por %p160, %p161
      %p163 = scmp.ne.s32.totalorder %s155, %s158
      %p164 = scmp.eq.s32.totalorder %s14, 0
      %p165 = por %p163, %p164
      %p166 = scmp.ne.s32.totalorder %s155, %s158
      %p167 = scmp.eq.s32.totalorder %s19, 1
      %p168 = por %p166, %p167
      %p169 = scmp.ne.s32.totalorder %s158, %s159
      %p170 = scmp.eq.s32.totalorder %s19, 0
      %p171 = por %p169, %p170
      %p172 = scmp.ne.s32.totalorder %s158, %s159
      %p173 = scmp.eq.s32.totalorder %s20, 1
      %p174 = por %p172, %p173
      %p176 = scmp.ne.s32.totalorder %s159, %s175
      %p177 = scmp.eq.s32.totalorder %s20, 0
      %p178 = por %p176, %p177
      %p179 = scmp.le.s32.totalorder 1, %s14
      %p180 = scmp.lt.s32.totalorder %s14, 3
      %p181 = pnand %p179, %p180
      %p182 = pneg %p181
      // Predicated region
      $region9: #{_forward_impl.1} parent=5 // pred_check
        _
      $region10: #{_forward_impl.1} parent=5 // pred_check_branch
        %184 = sbr.rel (%p181) target = $region12
      $region11: #{_forward_impl.1} parent=5 // pred_region
        %s185 = ssub.s32 %s14, 1
        // Predicated region
        $region13: #{_forward_impl.1} parent=11 // pred_check
          %p186 = pneg %p35
        $region14: #{_forward_impl.1} parent=11 // pred_check_branch
          %188 = sbr.rel (%p186) target = $region16
        $region15: #{_forward_impl.1} parent=11 // pred_region
          %s190 = ssub.s32 16, 16
          %191 = vsyncadd [#allocation4], %s190
          %s193 = sshll.u32 %s0, 4
          %s194 = int_to_ptr.vmem [resolvable:$true] %s193
          %196 = dma.vmem_to_smem %s194, 16, [#allocation2], [#allocation4]
        $region16: #{_forward_impl.1} parent=11 // pred_fallthru
          _
        // Predicated region
        $region17: #{_forward_impl.1} parent=11 // pred_check
          %p197 = pneg %p82
        $region18: #{_forward_impl.1} parent=11 // pred_check_branch
          %199 = sbr.rel (%p197) target = $region20
        $region19: #{_forward_impl.1} parent=11 // pred_region
          %s201 = ssub.s32 8192, 8192
          %202 = vsyncadd [#allocation3], %s201
          %s203 = sshll.u32 [#allocation5], 4
          %s204 = int_to_ptr.vmem [resolvable:$true] %s203
          %209 = dma.hbm_to_vmem [thread:$0]  %s2, 8192, %s204, [#allocation3], 128, 128, 8
        $region20: #{_forward_impl.1} parent=11 // pred_fallthru
          _
        // Predicated region
        $region21: #{_forward_impl.1} parent=11 // pred_check
          %p210 = pneg %p103
        $region22: #{_forward_impl.1} parent=11 // pred_check_branch
          %212 = sbr.rel (%p210) target = $region24
        $region23: #{_forward_impl.1} parent=11 // pred_region
          _
        $region24: #{_forward_impl.1} parent=11 // pred_fallthru
          _
        // Predicated region
        $region25: #{_forward_impl.1} parent=11 // pred_check
          %p213 = pneg %p124
        $region26: #{_forward_impl.1} parent=11 // pred_check_branch
          %215 = sbr.rel (%p213) target = $region28
        $region27: #{_forward_impl.1} parent=11 // pred_region
          _
        $region28: #{_forward_impl.1} parent=11 // pred_fallthru
          _
        // Predicated region
        $region29: #{_forward_impl.1} parent=11 // pred_check
          %p216 = pneg %p145
        $region30: #{_forward_impl.1} parent=11 // pred_check_branch
          %218 = sbr.rel (%p216) target = $region32
        $region31: #{_forward_impl.1} parent=11 // pred_region
          _
        $region32: #{_forward_impl.1} parent=11 // pred_fallthru
          _
      $region12: #{_forward_impl.1} parent=5 // pred_fallthru
        _
      %p219 = scmp.lt.s32.totalorder %s14, 2
      // Predicated region
      $region33: #{_forward_impl.1} parent=5 // pred_check
        %p220 = pneg %p219
      $region34: #{_forward_impl.1} parent=5 // pred_check_branch
        %222 = sbr.rel (%p220) target = $region36
      $region35: #{_forward_impl.1} parent=5 // pred_region
        // Predicated region
        $region37: #{_forward_impl.1} parent=35 // pred_check
          %p223 = pneg %p55
        $region38: #{_forward_impl.1} parent=35 // pred_check_branch
          %225 = sbr.rel (%p223) target = $region40
        $region39: #{_forward_impl.1} parent=35 // pred_region
          %p226 = scmp.lt.s32.totalorder %s14, 1
          %s227 = scalar_select %p226, %s14, 1
          %s228 = smul.addr %s227, 8
          %s229 = scalar_lea.vmem %s1, %s228
        $region40: #{_forward_impl.1} parent=35 // pred_fallthru
          _
      $region36: #{_forward_impl.1} parent=5 // pred_fallthru
        _
      %p230 = scmp.le.s32.totalorder 1, %s14
      %p231 = scmp.lt.s32.totalorder %s14, 3
      %p232 = pnand %p230, %p231
      %p233 = pneg %p232
      // Predicated region
      $region41: #{_forward_impl.1} parent=5 // pred_check
        _
      $region42: #{_forward_impl.1} parent=5 // pred_check_branch
        %235 = sbr.rel (%p232) target = $region44
      $region43: #{_forward_impl.1} parent=5 // pred_region
        %s236 = ssub.s32 %s14, 1
        // Predicated region
        $region45: #{_forward_impl.1} parent=43 // pred_check
          %p237 = pneg %p35
        $region46: #{_forward_impl.1} parent=43 // pred_check_branch
          %239 = sbr.rel (%p237) target = $region48
        $region47: #{_forward_impl.1} parent=43 // pred_region
          %240 = dma.done [#allocation4], 16
        $region48: #{_forward_impl.1} parent=43 // pred_fallthru
          _
        // Predicated region
        $region49: #{_forward_impl.1} parent=43 // pred_check
          %p241 = pneg %p82
        $region50: #{_forward_impl.1} parent=43 // pred_check_branch
          %243 = sbr.rel (%p241) target = $region52
        $region51: #{_forward_impl.1} parent=43 // pred_region
          %244 = dma.done [#allocation3], 8192
        $region52: #{_forward_impl.1} parent=43 // pred_fallthru
          _
        %245 = sfence
        %p246 = pneg %p35
        %p247 = pneg %p32
        %p248 = scmp.lt.s32.totalorder %s19, 1
        %s249 = scalar_select %p248, %s19, 1
        %s250 = smul.addr %s249, 8
        %s251 = scalar_lea.vmem %s1, %s250
        %p252 = pneg %p61
        %p253 = pneg %p58
        %p254 = pneg %p82
        %p255 = pneg %p79
        %p256 = pneg %p103
        %p257 = pneg %p100
        %p258 = pneg %p124
        %p259 = pneg %p121
        %p260 = pneg %p145
        %p261 = pneg %p142
        %p262 = pneg %p171
        %p263 = pneg %p168
        %p264 = scmp.lt.s32.totalorder %s19, 1
        %s265 = scalar_select %p264, %s19, 1
        %s266 = smul.addr %s265, 8
        %s267 = scalar_lea.vmem %s6, %s266
        %p268 = scmp.lt.s32.totalorder %s19, 1
        %s269 = scalar_select %p268, %s19, 1
        %s270 = smul.addr %s269, 8
        %s271 = scalar_lea.vmem %s1, %s270
        %p272 = scmp.lt.s32.totalorder %s19, 1
        %s273 = scalar_select %p272, %s19, 1
        %s274 = smul.addr %s273, 8
        %s275 = scalar_lea.vmem %s6, %s274
        %v277 = vld [vmem:[%s3] sm:$0xf]
        %v278 = vld [vmem:[%s3 + $0x4] sm:$0xf]
        %v279 = vld [vmem:[%s3 + $0x8] sm:$0xf]
        %v280 = vld [vmem:[%s3 + $0xc] sm:$0xf]
        %v281 = vld [vmem:[%s3 + $0x10] sm:$0xf]
        %v282 = vld [vmem:[%s3 + $0x14] sm:$0xf]
        %v283 = vld [vmem:[%s3 + $0x18] sm:$0xf]
        %v284 = vld [vmem:[%s3 + $0x1c] sm:$0xf]
        %v285 = vld [vmem:[%s4] sm:$0xf]
        %v286 = vld [vmem:[%s5] sm:$0xff]
        %v287 = vld [vmem:[%s271] sm:$0xff]
        loop: start=0, step=1, limit=8
        $region53: #{_forward_impl.1} parent=43 // loop_pre_header
          _
        $region54: #{_forward_impl.1} parent=43 // loop_header
          %s289 = sphi 0, %s293
          %p290 = scmp.ge.s32.totalorder %s289, 8
          %v294 = vphi %v287, %v560
        $region55: #{_forward_impl.1} parent=43 // loop_header_branch
          %292 = sbr.rel (%p290) target = $region59
        $region56: #{_forward_impl.1} parent=43 // loop_body
          %s295 = smul.u32 %s289, 64
          %s296 = scalar_lea.vmem [#allocation5], %s295
          %v297 = vld [vmem:[%s296] sm:$0xff]
          %v298 = vld [vmem:[%s296 + $0x8] sm:$0xff]
          %v299 = vld [vmem:[%s296 + $0x10] sm:$0xff]
          %v300 = vld [vmem:[%s296 + $0x18] sm:$0xff]
          %v301 = vld [vmem:[%s296 + $0x20] sm:$0xff]
          %v302 = vld [vmem:[%s296 + $0x28] sm:$0xff]
          %v303 = vld [vmem:[%s296 + $0x30] sm:$0xff]
          %v304 = vld [vmem:[%s296 + $0x38] sm:$0xff]
          %v305 = vpack.c.bf16 %v294, %v294
          %307 = vset.pattern.permute.xlu0 0
          %308 = vperm.xlu0 %307, %v297
          %v309 = vpop.permute.xlu0 %308
          %312 = vset.pattern.permute.xlu0 0
          %313 = vperm.xlu0 %312, %v298
          %v314 = vpop.permute.xlu0 %313
          %317 = vset.pattern.permute.xlu0 0
          %318 = vperm.xlu0 %317, %v299
          %v319 = vpop.permute.xlu0 %318
          %322 = vset.pattern.permute.xlu0 0
          %323 = vperm.xlu0 %322, %v300
          %v324 = vpop.permute.xlu0 %323
          %327 = vset.pattern.permute.xlu0 0
          %328 = vperm.xlu0 %327, %v301
          %v329 = vpop.permute.xlu0 %328
          %332 = vset.pattern.permute.xlu0 0
          %333 = vperm.xlu0 %332, %v302
          %v334 = vpop.permute.xlu0 %333
          %337 = vset.pattern.permute.xlu0 0
          %338 = vperm.xlu0 %337, %v303
          %v339 = vpop.permute.xlu0 %338
          %342 = vset.pattern.permute.xlu0 0
          %343 = vperm.xlu0 %342, %v304
          %v344 = vpop.permute.xlu0 %343
          %v354 = vunpack.c.l.b16 %v277
          %v355 = vunpack.c.l.b16 %v278
          %v356 = vunpack.c.l.b16 %v279
          %v357 = vunpack.c.l.b16 %v280
          %v358 = vunpack.c.l.b16 %v281
          %v359 = vunpack.c.l.b16 %v282
          %v360 = vunpack.c.l.b16 %v283
          %v361 = vunpack.c.l.b16 %v284
          %v362 = vpack.c.b16 %v355, %v354
          %v363 = vpack.c.b16 %v357, %v356
          %v364 = vpack.c.b16 %v359, %v358
          %v365 = vpack.c.b16 %v361, %v360
          %vm366 = vcmask 64512
          %v368 = vsel %vm366, %v362, 0
          %v371 = vsel %vm366, %v363, 0
          %v374 = vsel %vm366, %v364, 0
          %v377 = vsel %vm366, %v365, 0
          %vm379 = vcmask 1043456
          %v381 = vsel %vm379, %v305, 0
          %383 = vmatprep.subr.bf16.mxu0 0
          %384 = vmatpush1.bf16.msra.mxu0 %v381
          %385 = vmatprep.subr.bf16.mxu0 0
          %386 = vmatpush1.bf16.msra.mxu0 0
          %387 = vmatprep.subr.bf16.mxu0 0
          %388 = vmatpush1.bf16.msra.mxu0 0
          %389 = vmatprep.subr.bf16.mxu0 0
          %390 = vmatpush1.bf16.msra.mxu0 0
          %391 = vmatprep.subr.bf16.mxu0 0
          %392 = vmatpush1.bf16.msra.mxu0 0
          %393 = vmatprep.subr.bf16.mxu0 0
          %394 = vmatpush1.bf16.msra.mxu0 0
          %395 = vmatprep.subr.bf16.mxu0 0
          %396 = vmatpush1.bf16.msra.mxu0 0
          %397 = vmatprep.subr.bf16.mxu0 0
          %398 = vmatpush1.bf16.msra.mxu0 0
          %399 = vmatprep.subr.bf16.mxu0 0
          %400 = vmatpush1.bf16.msra.mxu0 0
          %401 = vmatprep.subr.bf16.mxu0 0
          %402 = vmatpush1.bf16.msra.mxu0 0
          %403 = vmatprep.subr.bf16.mxu0 0
          %404 = vmatpush1.bf16.msra.mxu0 0
          %405 = vmatprep.subr.bf16.mxu0 0
          %406 = vmatpush1.bf16.msra.mxu0 0
          %407 = vmatprep.subr.bf16.mxu0 0
          %408 = vmatpush1.bf16.msra.mxu0 0
          %409 = vmatprep.subr.bf16.mxu0 0
          %410 = vmatpush1.bf16.msra.mxu0 0
          %411 = vmatprep.subr.bf16.mxu0 0
          %412 = vmatpush1.bf16.msra.mxu0 0
          %413 = vmatprep.subr.bf16.mxu0 0
          %414 = vmatpush1.bf16.msra.mxu0 0
          %415 = vmatprep.mubr.bf16.mxu0 0
          %416 = vmatmul.mubr.bf16.gmra.mrb[0].mxu0 %v368
          %v417 = vpop.f32.mrb[0].mxu0
          %v418 = vadd.f32 %v309, %v417
          %v419 = vpop.f32.mrb[0].mxu0
          %v420 = vpop.f32.mrb[0].mxu0
          %v421 = vadd.f32 %v314, %v420
          %v422 = vpop.f32.mrb[0].mxu0
          %423 = vmatprep.mubr.bf16.mxu0 0
          %424 = vmatmul.mubr.bf16.gmra.mrb[0].mxu0 %v371
          %v425 = vpop.f32.mrb[0].mxu0
          %v426 = vadd.f32 %v319, %v425
          %v427 = vpop.f32.mrb[0].mxu0
          %v428 = vpop.f32.mrb[0].mxu0
          %v429 = vadd.f32 %v324, %v428
          %v430 = vpop.f32.mrb[0].mxu0
          %431 = vmatprep.mubr.bf16.mxu0 0
          %432 = vmatmul.mubr.bf16.gmra.mrb[0].mxu0 %v374
          %v433 = vpop.f32.mrb[0].mxu0
          %v434 = vadd.f32 %v329, %v433
          %v435 = vpop.f32.mrb[0].mxu0
          %v436 = vpop.f32.mrb[0].mxu0
          %v437 = vadd.f32 %v334, %v436
          %v438 = vpop.f32.mrb[0].mxu0
          %439 = vmatprep.mubr.bf16.mxu0 0
          %440 = vmatmul.mubr.bf16.gmra.mrb[0].mxu0 %v377
          %v441 = vpop.f32.mrb[0].mxu0
          %v442 = vadd.f32 %v339, %v441
          %v443 = vpop.f32.mrb[0].mxu0
          %v444 = vpop.f32.mrb[0].mxu0
          %v445 = vadd.f32 %v344, %v444
          %v446 = vpop.f32.mrb[0].mxu0
          %447 = vdwg.mxu0
          %v448 = vmul.f32 %v418, 0.5
          %v449 = vmul.f32 %v421, 0.5
          %v450 = vmul.f32 %v426, 0.5
          %v451 = vmul.f32 %v429, 0.5
          %v452 = vmul.f32 %v434, 0.5
          %v453 = vmul.f32 %v437, 0.5
          %v454 = vmul.f32 %v442, 0.5
          %v455 = vmul.f32 %v445, 0.5
          %v456 = vtanh.pop %v448
          %v457 = vtanh.pop %v449
          %v458 = vtanh.pop %v450
          %v459 = vtanh.pop %v451
          %v460 = vtanh.pop %v452
          %v461 = vtanh.pop %v453
          %v462 = vtanh.pop %v454
          %v463 = vtanh.pop %v455
          %v464 = vmul.f32 %v456, 0.5
          %v465 = vmul.f32 %v457, 0.5
          %v466 = vmul.f32 %v458, 0.5
          %v467 = vmul.f32 %v459, 0.5
          %v468 = vmul.f32 %v460, 0.5
          %v469 = vmul.f32 %v461, 0.5
          %v470 = vmul.f32 %v462, 0.5
          %v471 = vmul.f32 %v463, 0.5
          %v472 = vadd.f32 %v464, 0.5
          %v473 = vadd.f32 %v465, 0.5
          %v474 = vadd.f32 %v466, 0.5
          %v475 = vadd.f32 %v467, 0.5
          %v476 = vadd.f32 %v468, 0.5
          %v477 = vadd.f32 %v469, 0.5
          %v478 = vadd.f32 %v470, 0.5
          %v479 = vadd.f32 %v471, 0.5
          %v480 = vmul.f32 %v418, %v472
          %v481 = vmul.f32 %v421, %v473
          %v482 = vmul.f32 %v426, %v474
          %v483 = vmul.f32 %v429, %v475
          %v484 = vmul.f32 %v434, %v476
          %v485 = vmul.f32 %v437, %v477
          %v486 = vmul.f32 %v442, %v478
          %v487 = vmul.f32 %v445, %v479
          %v488 = vpack.c.bf16 %v481, %v480
          %v489 = vpack.c.bf16 %v483, %v482
          %v490 = vpack.c.bf16 %v485, %v484
          %v491 = vpack.c.bf16 %v487, %v486
          %493 = vset.pattern.permute.xlu0 0
          %494 = vperm.xlu0 %493, %v286
          %v495 = vpop.permute.xlu0 %494
          %vm497 = vcmask 523264
          %v499 = vsel %vm497, %v285, 0
          %501 = vmatprep.subr.bf16.mxu0 0
          %502 = vmatpush1.bf16.msra.mxu0 %v488
          %503 = vmatprep.subr.bf16.mxu0 0
          %504 = vmatpush1.bf16.msra.mxu0 %v489
          %505 = vmatprep.subr.bf16.mxu0 0
          %506 = vmatpush1.bf16.msra.mxu0 %v490
          %507 = vmatprep.subr.bf16.mxu0 0
          %508 = vmatpush1.bf16.msra.mxu0 %v491
          %509 = vmatprep.subr.bf16.mxu0 0
          %510 = vmatpush1.bf16.msra.mxu0 0
          %511 = vmatprep.subr.bf16.mxu0 0
          %512 = vmatpush1.bf16.msra.mxu0 0
          %513 = vmatprep.subr.bf16.mxu0 0
          %514 = vmatpush1.bf16.msra.mxu0 0
          %515 = vmatprep.subr.bf16.mxu0 0
          %516 = vmatpush1.bf16.msra.mxu0 0
          %517 = vmatprep.subr.bf16.mxu0 0
          %518 = vmatpush1.bf16.msra.mxu0 0
          %519 = vmatprep.subr.bf16.mxu0 0
          %520 = vmatpush1.bf16.msra.mxu0 0
          %521 = vmatprep.subr.bf16.mxu0 0
          %522 = vmatpush1.bf16.msra.mxu0 0
          %523 = vmatprep.subr.bf16.mxu0 0
          %524 = vmatpush1.bf16.msra.mxu0 0
          %525 = vmatprep.subr.bf16.mxu0 0
          %526 = vmatpush1.bf16.msra.mxu0 0
          %527 = vmatprep.subr.bf16.mxu0 0
          %528 = vmatpush1.bf16.msra.mxu0 0
          %529 = vmatprep.subr.bf16.mxu0 0
          %530 = vmatpush1.bf16.msra.mxu0 0
          %531 = vmatprep.subr.bf16.mxu0 0
          %532 = vmatpush1.bf16.msra.mxu0 0
          %533 = vmatprep.mubr.bf16.mxu0 0
          %534 = vmatmul.mubr.bf16.gmra.mrb[0].mxu0 %v499
          %v535 = vpop.f32.mrb[0].mxu0
          %v536 = vadd.f32 %v495, %v535
          %v537 = vpop.f32.mrb[0].mxu0
          %v538 = vpop.f32.mrb[0].mxu0
          %v539 = vpop.f32.mrb[0].mxu0
          %540 = vdwg.mxu0
          %s541 = smul.u32 %s289, 4
          %s542 = sld [smem:[#allocation2 + %s541]]
          %s543 = sadd.s32 %s541, 1
          %s544 = sld [smem:[#allocation2 + %s543]]
          %s545 = sadd.s32 %s541, 2
          %s546 = sld [smem:[#allocation2 + %s545]]
          %s547 = sadd.s32 %s541, 3
          %s548 = sld [smem:[#allocation2 + %s547]]
          %v549 = vstv %s542
          %v550 = vmul.f32 %v549, %v294
          %v551 = vstv %s544
          %v552 = vmul.f32 %v551, %v536
          %v553 = vsub.f32 %v550, %v552
          %v554 = vmax.f32 %v553, -1.0
          %v555 = vmin.f32 %v554, 1.0
          %v556 = vstv %s546
          %v557 = vmul.f32 %v556, %v294
          %v558 = vstv %s548
          %v559 = vmul.f32 %v558, %v555
          %v560 = vadd.f32 %v557, %v559
        $region57: #{_forward_impl.1} parent=43 // loop_footer
          %s293 = sadd.s32 1, %s289
        $region58: #{_forward_impl.1} parent=43 // loop_footer_branch
          %288 = sbr.rel target = $region54
        $region59: #{_forward_impl.1} parent=43 // loop_exit
          _
        %561 = vst [vmem:[%s275] sm:$0xff] %v294
        %p562 = scmp.lt.s32.totalorder %s19, 1
        %s563 = scalar_select %p562, %s19, 1
        %s564 = smul.addr %s563, 8
        %s565 = scalar_lea.vmem %s6, %s564
        // Predicated region
        $region60: #{_forward_impl.1} parent=43 // pred_check
          %p566 = pneg %p168
        $region61: #{_forward_impl.1} parent=43 // pred_check_branch
          %568 = sbr.rel (%p566) target = $region63
        $region62: #{_forward_impl.1} parent=43 // pred_region
          _
        $region63: #{_forward_impl.1} parent=43 // pred_fallthru
          _
      $region44: #{_forward_impl.1} parent=5 // pred_fallthru
        _
      %p569 = scmp.le.s32.totalorder 2, %s14
      // Predicated region
      $region64: #{_forward_impl.1} parent=5 // pred_check
        %p570 = pneg %p569
      $region65: #{_forward_impl.1} parent=5 // pred_check_branch
        %572 = sbr.rel (%p570) target = $region67
      $region66: #{_forward_impl.1} parent=5 // pred_region
        %s573 = ssub.s32 %s14, 2
        // Predicated region
        $region68: #{_forward_impl.1} parent=66 // pred_check
          %p574 = pneg %p174
        $region69: #{_forward_impl.1} parent=66 // pred_check_branch
          %576 = sbr.rel (%p574) target = $region71
        $region70: #{_forward_impl.1} parent=66 // pred_region
          %p577 = scmp.lt.s32.totalorder %s20, 1
          %s578 = scalar_select %p577, %s20, 1
          %s579 = smul.addr %s578, 8
          %s580 = scalar_lea.vmem %s6, %s579
        $region71: #{_forward_impl.1} parent=66 // pred_fallthru
          _
      $region67: #{_forward_impl.1} parent=5 // pred_fallthru
        _
    $region6: #{_forward_impl.1} parent=1 // loop_footer
      %s18 = sadd.s32 1, %s14
    $region7: #{_forward_impl.1} parent=1 // loop_footer_branch
      %13 = sbr.rel target = $region3
    $region8: #{_forward_impl.1} parent=1 // loop_exit
      _
    %581 = vsyncpa [#allocation3], 1
    %s582 = scalar_lea.sflag [#allocation3], 1
    %583 = vsyncpa %s582, 1
    %584 = vsyncpa [#allocation4], 1
    %s585 = scalar_lea.sflag [#allocation4], 1
    %586 = vsyncpa %s585, 1

</llo_original>
